<compile_context>
chip_gen: v5e
topology: v5e:2x2
jax: 0.10.0
libtpu: 0.0.40
codegen_flags: <defaults>
</compile_context>

<pallas_src>
import jax
import jax.numpy as jnp
from jax.experimental import pallas as pl
from jax.experimental.pallas import tpu as pltpu

INPUT_DIM = 6 * 2    # 12
OUTPUT_DIM = 6

# Lanes per grid step in the transposed layout.  f32 VMEM per step:
#   x tile  [16(pad 12), 16384] * 4B * 2 bufs ~= 2 MiB
#   out tile[ 8(pad  6), 16384] * 4B * 2 bufs ~= 1 MiB
# comfortably inside v7x's 32 MiB scoped / 64 MiB physical VMEM.
_DEFAULT_TM = 16384


def _linear_kernel(w_ref, b_ref, xt_ref, ot_ref):
    # out_t = W @ x_t + b  -- one MXU matmul per tile, lane-dense along M;
    # bias [6, 1] broadcasts along lanes.
    ot_ref[...] = (
        jnp.dot(w_ref[...], xt_ref[...], preferred_element_type=jnp.float32)
        + b_ref[...]
    )


def linear_model_forward(x, weight, bias, *, tm=_DEFAULT_TM):
    """Equivalent of LinearModel.forward.

    x:      any shape whose total size is divisible by INPUT_DIM
    weight: [OUTPUT_DIM, INPUT_DIM]  (PyTorch nn.Linear layout)
    bias:   [OUTPUT_DIM]
    returns [M, OUTPUT_DIM] with M = x.size // INPUT_DIM
    """
    x2d = x.reshape(-1, INPUT_DIM).astype(jnp.float32)    # x.view(-1, input_dim)
    m = x2d.shape[0]
    if m == 0:
        return jnp.zeros((0, OUTPUT_DIM), jnp.float32)

    # Layout plumbing only (no compute): batch -> lanes.
    # TODO(synk): optional bf16 feed to the MXU (keep f32 accum) would halve
    # HBM read bytes; kept f32 to match the PyTorch module's dtype exactly.
    x_t = x2d.T                                            # [K, M]
    w = weight.astype(jnp.float32)                         # [N, K]
    b = bias.astype(jnp.float32).reshape(OUTPUT_DIM, 1)    # [N, 1]

    # Tile M.  If everything fits in one tile, use the full extent (legal for
    # any M since block == full array dim); otherwise use a lane-aligned tile
    # and let Pallas mask the partial trailing block -- no wrapper-side
    # full-array padding pass.
    if m <= tm:
        block_m, grid_m = m, 1
    else:
        assert tm % 128 == 0, "tile size along M must be lane aligned"
        block_m, grid_m = tm, pl.cdiv(m, tm)

    out_t = pl.pallas_call(
        _linear_kernel,
        out_shape=jax.ShapeDtypeStruct((OUTPUT_DIM, m), jnp.float32),
        grid=(grid_m,),
        in_specs=[
            pl.BlockSpec((OUTPUT_DIM, INPUT_DIM), lambda i: (0, 0)),   # W (resident)
            pl.BlockSpec((OUTPUT_DIM, 1), lambda i: (0, 0)),           # b (resident)
            pl.BlockSpec((INPUT_DIM, block_m), lambda i: (0, i)),      # x_t tile
        ],
        out_specs=pl.BlockSpec((OUTPUT_DIM, block_m), lambda i: (0, i)),
        compiler_params=pltpu.CompilerParams(
            dimension_semantics=("parallel",),       # megacore-shard M on v7x
            vmem_limit_bytes=32 * 1024 * 1024,
        ),
    )(w, b, x_t)

    return out_t.T                                         # [M, N]


def init_params(key):
    # Deterministic init mirroring nn.Linear's shapes: W [out, in], b [out].
    kw, kb = jax.random.split(key)
    bound = 1.0 / jnp.sqrt(INPUT_DIM)
    weight = jax.random.uniform(kw, (OUTPUT_DIM, INPUT_DIM),
                                minval=-bound, maxval=bound, dtype=jnp.float32)
    bias = jax.random.uniform(kb, (OUTPUT_DIM,),
                              minval=-bound, maxval=bound, dtype=jnp.float32)
    return weight, bias


if __name__ == "__main__":
    key = jax.random.PRNGKey(0)
    k_x, k_x2, k_p = jax.random.split(key, 3)
    weight, bias = init_params(k_p)

    # Input consistent with forward: view(-1, 12). Shape (4, 6, 2) -> (4, 12).
    x = jax.random.normal(k_x, (4, 6, 2), dtype=jnp.float32)
    out = jax.block_until_ready(linear_model_forward(x, weight, bias))
    ref = x.reshape(-1, INPUT_DIM) @ weight.T + bias
    assert out.shape == (4, OUTPUT_DIM)
    assert jnp.allclose(out, ref, atol=1e-5, rtol=1e-5)

    # Exercise the tiled path (grid of 3 with a partial trailing block).
    x2 = jax.random.normal(k_x2, (300, INPUT_DIM), dtype=jnp.float32)
    out2 = jax.block_until_ready(linear_model_forward(x2, weight, bias, tm=128))
    ref2 = x2 @ weight.T + bias
    assert out2.shape == (300, OUTPUT_DIM)
    assert jnp.allclose(out2, ref2, atol=1e-5, rtol=1e-5)

    print("KERNEL_OK")
</pallas_src>

<mosaic_0001>
module attributes {stable_mosaic.version = 11 : i64} {
  func.func @_linear_kernel(%arg0: i32, %arg1: memref<6x12xf32, #tpu.memory_space<vmem>>, %arg2: memref<6x1xf32, #tpu.memory_space<vmem>>, %arg3: memref<12x4xf32, #tpu.memory_space<vmem>>, %arg4: memref<6x4xf32, #tpu.memory_space<vmem>>) attributes {dimension_semantics = [#tpu.dimension_semantics<parallel>], iteration_bounds = array<i64: 1>, scalar_prefetch = 0 : i64, scratch_operands = 0 : i64, tpu.core_type = #tpu.core_type<tc>, window_params = [{pipeline_mode = #tpu.pipeline_mode<synchronous>, transform_indices = @transform_0, window_bounds = array<i64: 6, 12>}, {pipeline_mode = #tpu.pipeline_mode<synchronous>, transform_indices = @transform_1, window_bounds = array<i64: 6, 1>}, {transform_indices = @transform_2, window_bounds = array<i64: 12, 4>}, {transform_indices = @transform_3, window_bounds = array<i64: 6, 4>}]} {
    %c0 = arith.constant 0 : index
    %c0_0 = arith.constant 0 : index
    %0 = vector.load %arg1[%c0, %c0_0] : memref<6x12xf32, #tpu.memory_space<vmem>>, vector<6x12xf32>
    %c0_1 = arith.constant 0 : index
    %c0_2 = arith.constant 0 : index
    %1 = vector.load %arg3[%c0_1, %c0_2] : memref<12x4xf32, #tpu.memory_space<vmem>>, vector<12x4xf32>
    %cst = arith.constant dense<0.000000e+00> : vector<6x4xf32>
    %2 = tpu.matmul %0, %1, %cst {dimension_numbers = #tpu.dot_dimension_numbers<[1], [0], [0], [1], [0, 0, 1, 1], [], []>} : vector<6x12xf32>, vector<12x4xf32>, vector<6x4xf32> -> vector<6x4xf32>
    %c0_3 = arith.constant 0 : index
    %c0_4 = arith.constant 0 : index
    %3 = vector.load %arg2[%c0_3, %c0_4] : memref<6x1xf32, #tpu.memory_space<vmem>>, vector<6x1xf32>
    %4 = vector.broadcast %3 : vector<6x1xf32> to vector<6x4xf32>
    %5 = arith.addf %2, %4 : vector<6x4xf32>
    %c0_5 = arith.constant 0 : index
    %c0_6 = arith.constant 0 : index
    %6 = vector.load %arg4[%c0_5, %c0_6] : memref<6x4xf32, #tpu.memory_space<vmem>>, vector<6x4xf32>
    tpu.vector_store %arg4[%c0_5, %c0_6], %5 {strides = array<i32>} : memref<6x4xf32, #tpu.memory_space<vmem>>, vector<6x4xf32>,
    return
  }
  func.func @transform_0(%arg0: i32) -> (i32, i32) {
    %c0_i32 = arith.constant 0 : i32
    %c0_i32_0 = arith.constant 0 : i32
    %c0_i32_1 = arith.constant 0 : i32
    return %c0_i32, %c0_i32_0 : i32, i32
  }
  func.func @transform_1(%arg0: i32) -> (i32, i32) {
    %c0_i32 = arith.constant 0 : i32
    %c0_i32_0 = arith.constant 0 : i32
    %c0_i32_1 = arith.constant 0 : i32
    return %c0_i32, %c0_i32_0 : i32, i32
  }
  func.func @transform_2(%arg0: i32) -> (i32, i32) {
    %c0_i32 = arith.constant 0 : i32
    %c0_i32_0 = arith.constant 0 : i32
    return %c0_i32, %arg0 : i32, i32
  }
  func.func @transform_3(%arg0: i32) -> (i32, i32) {
    %c0_i32 = arith.constant 0 : i32
    %c0_i32_0 = arith.constant 0 : i32
    return %c0_i32, %arg0 : i32, i32
  }
}

</mosaic_0001>

<llo_original>
// kernel: tpu_custom_call.1
$region0: #{tpu_custom_call.1}
  #allocation0 [shape = 'u32[]', space=smem, size = 0x4, offset = 0x4, fixed_abs, tag = 'smem constant byte address 0x4 - core index']
  #allocation1 [shape = 'u32[72,128]{1,0:T(1,128)}', space=vmem, size = 0x9000, scoped, tag = 'internal scratch']
  %s0 = inlined_call_operand.vmem [shape: f32[6,12], index: 0, kind: input, shape index: {}]
  %s1 = inlined_call_operand.vmem [shape: f32[6,1], index: 1, kind: input, shape index: {}]
  %s2 = inlined_call_operand.vmem [shape: f32[12,4], index: 2, kind: input, shape index: {}]
  %s3 = inlined_call_operand.vmem [shape: f32[6,4], index: 3, kind: output, shape index: {}]
  %s4 = sld [smem:[#allocation0]]
  $region22: #{tpu_custom_call.1} parent=0
    _
  %s6 = ssub.s32 1, %s4
  %s7 = scalar_select 0, %s6, %s4
  // Predicated region
  $region2: #{tpu_custom_call.1} parent=0 // pred_check
    _
  $region3: #{tpu_custom_call.1} parent=0 // pred_check_branch
    %9 = sbr.rel (0) target = $region5
  $region4: #{tpu_custom_call.1} parent=0 // pred_region
    _
  $region5: #{tpu_custom_call.1} parent=0 // pred_fallthru
    _
  // Predicated region
  $region6: #{tpu_custom_call.1} parent=0 // pred_check
    _
  $region7: #{tpu_custom_call.1} parent=0 // pred_check_branch
    %11 = sbr.rel (0) target = $region9
  $region8: #{tpu_custom_call.1} parent=0 // pred_region
    _
  $region9: #{tpu_custom_call.1} parent=0 // pred_fallthru
    _
  // Predicated region
  $region10: #{tpu_custom_call.1} parent=0 // pred_check
    _
  $region11: #{tpu_custom_call.1} parent=0 // pred_check_branch
    %13 = sbr.rel (0) target = $region13
  $region12: #{tpu_custom_call.1} parent=0 // pred_region
    _
  $region13: #{tpu_custom_call.1} parent=0 // pred_fallthru
    _
  %v14 = vld [vmem:[%s0] sm:$0x3f]
  %v15 = vld [vmem:[%s2] sm:$0xff]
  %v16 = vld [vmem:[%s2 + $0x8] sm:$0xf]
  %v17 = vld [vmem:[%s1] sm:$0x3f]
  %19 = vset.pattern.permute.xlu0 0
  %20 = vperm.xlu0 %19, %v17
  %v21 = vpop.permute.xlu0 %20
  %vm23 = vcmask 97280
  %v25 = vsel %vm23, %v14, 0
  %vm27 = vcmask 1043456
  %v29 = vsel %vm27, %v16, 0
  %31 = vmatpush.msra.mxu0 0.0
  %32 = vmatpush.msra.mxu0 0.0
  %33 = vmatpush.msra.mxu0 0.0
  %34 = vmatpush.msra.mxu0 0.0
  %35 = vmatpush.msra.mxu0 0.0
  %36 = vmatpush.msra.mxu0 0.0
  %37 = vmatpush.msra.mxu0 0.0
  %38 = vmatpush.msra.mxu0 0.0
  %39 = vmatpush.msra.mxu0 0.0
  %40 = vmatpush.msra.mxu0 0.0
  %41 = vmatpush.msra.mxu0 0.0
  %42 = vmatpush.msra.mxu0 0.0
  %43 = vmatpush.msra.mxu0 0.0
  %44 = vmatpush.msra.mxu0 0.0
  %45 = vmatpush.msra.mxu0 %v29
  %46 = vmatpush.msra.mxu0 %v15
  %47 = vmatmul.f32.gmra.mxu0 %v25
  %v48 = vpop.f32.mrf.mxu0
  %v49 = vadd.f32 %v21, %v48
  %50 = vdwg.mxu0
  %vm51 = vcmask 29696
  %52 = vst.msk [vmem:[%s3] sm:$0x3f] %vm51, %v49
  // Predicated region
  $region14: #{tpu_custom_call.1} parent=0 // pred_check
    _
  $region15: #{tpu_custom_call.1} parent=0 // pred_check_branch
    %54 = sbr.rel (0) target = $region17
  $region16: #{tpu_custom_call.1} parent=0 // pred_region
    _
  $region17: #{tpu_custom_call.1} parent=0 // pred_fallthru
    _
  // Predicated region
  $region18: #{tpu_custom_call.1} parent=0 // pred_check
    _
  $region19: #{tpu_custom_call.1} parent=0 // pred_check_branch
    %56 = sbr.rel (0) target = $region21
  $region20: #{tpu_custom_call.1} parent=0 // pred_region
    _
  $region21: #{tpu_custom_call.1} parent=0 // pred_fallthru
    _

</llo_original>
